<compile_context>
chip_gen: v7x
topology: tpu7x:2x2x1
jax: 0.10.0
libtpu: 0.0.40
codegen_flags: <defaults>
</compile_context>

<pallas_src>
import functools

import jax
import jax.numpy as jnp
from jax.experimental import pallas as pl
from jax.experimental.pallas import tpu as pltpu


# ----------------------------- tiling helpers -----------------------------

_STATS_TILE_BYTES = 3 << 20   # per-block budget for the read-only stats pass
_NORM_TILE_ROWS = 2048        # rows of 128 lanes -> 1 MiB per f32 plane


def _pick_stats_block(bs, c, hw, itemsize, target_bytes=_STATS_TILE_BYTES):
    """Choose (nb, tile_hw): images-per-block and lane tile for the stats pass."""
    if hw % 128 == 0:
        cap = max(128, (target_bytes // max(1, c * itemsize)) // 128 * 128)
        tile_hw, t, limit = 128, 128, min(hw, cap)
        while t <= limit:
            if hw % t == 0:
                tile_hw = t
            t += 128
    else:
        # Full-extent lane block is always legal (some lane padding, but only
        # the stats pass ever sees the un-flattened (C, HW) layout).
        tile_hw = hw
    nb = 1
    if tile_hw == hw:  # whole spatial plane fits -> batch images per grid step
        per_img = max(1, c * hw * itemsize)
        d = 1
        while d <= bs:
            if bs % d == 0 and d * per_img <= target_bytes:
                nb = d
            d += 1
    return nb, tile_hw


def _pick_tile_r(r, cap_rows=_NORM_TILE_ROWS):
    """Largest multiple-of-8 row tile dividing r (or full extent) for (r,128) planes."""
    if r <= cap_rows or r % 8 != 0:
        return r
    best, t = 8, 8
    while t <= cap_rows:
        if r % t == 0:
            best = t
        t += 8
    return best


# ----------------------------- stats pass -----------------------------

def _stats_kernel(x_ref, g_ref, b_ref,
                  mean_ref, std_ref, scale_ref, shift_ref,
                  sum_sc, sumsq_sc, *, n_total):
    """Per-channel sum/sumsq (f32, lane partials) over the adv half; finalize
    emits mean, std, scale=gamma/std, shift=beta-mean*scale directly."""
    bb = pl.program_id(0)
    tt = pl.program_id(1)

    @pl.when(jnp.logical_and(bb == 0, tt == 0))
    def _():
        sum_sc[...] = jnp.zeros_like(sum_sc)
        sumsq_sc[...] = jnp.zeros_like(sumsq_sc)

    x = x_ref[...].astype(jnp.float32)          # (nb, C, L)
    xs = jnp.sum(x, axis=0)                     # (C, L)  leading-axis adds (VALU)
    xs2 = jnp.sum(x * x, axis=0)                # (C, L)

    lanes_l = xs.shape[-1]
    lanes_s = sum_sc.shape[-1]
    if lanes_l == lanes_s:
        sum_sc[...] += xs
        sumsq_sc[...] += xs2
    else:
        # Static 128-lane slabs: pure VALU adds, no per-tile XLU reduction.
        for k in range(lanes_l // lanes_s):
            sl = slice(k * lanes_s, (k + 1) * lanes_s)
            sum_sc[...] += xs[:, sl]
            sumsq_sc[...] += xs2[:, sl]

    @pl.when(jnp.logical_and(bb == pl.num_programs(0) - 1,
                             tt == pl.num_programs(1) - 1))
    def _():
        # Only cross-lane (XLU) reductions in the whole pass: here, once.
        s = jnp.sum(sum_sc[...], axis=1, keepdims=True)       # (C, 1)
        s2 = jnp.sum(sumsq_sc[...], axis=1, keepdims=True)    # (C, 1)
        inv_n = 1.0 / n_total
        mean = s * inv_n
        # Unbiased variance (torch.std default).  Clamp tiny negatives from
        # cancellation so sqrt never NaNs (the reference cannot go negative).
        var = jnp.maximum((s2 - n_total * mean * mean) * (1.0 / (n_total - 1)),
                          0.0)
        std = jnp.sqrt(var)
        scale = g_ref[...] / std            # NOTE: no eps, matching the module
        shift = b_ref[...] - mean * scale
        mean_ref[...] = mean
        std_ref[...] = std
        scale_ref[...] = scale
        shift_ref[...] = shift


def _run_stats(x3, g, b_, bs, nb, tile_hw):
    N, C, HW = x3.shape
    lanes = 128 if tile_hw % 128 == 0 else tile_hw
    n_total = bs * HW
    return pl.pallas_call(
        functools.partial(_stats_kernel, n_total=n_total),
        out_shape=(jax.ShapeDtypeStruct((C, 1), jnp.float32),) * 4,
        grid_spec=pltpu.PrefetchScalarGridSpec(
            num_scalar_prefetch=0,
            grid=(bs // nb, HW // tile_hw),      # only the adv half is ever read
            in_specs=[
                pl.BlockSpec((nb, C, tile_hw), lambda b, t: (b, 0, t)),
                pl.BlockSpec((C, 1), lambda b, t: (0, 0)),   # gamma (resident)
                pl.BlockSpec((C, 1), lambda b, t: (0, 0)),   # beta  (resident)
            ],
            out_specs=[pl.BlockSpec((C, 1), lambda b, t: (0, 0))] * 4,
            scratch_shapes=[
                pltpu.VMEM((C, lanes), jnp.float32),
                pltpu.VMEM((C, lanes), jnp.float32),
            ],
        ),
        compiler_params=pltpu.CompilerParams(
            dimension_semantics=("arbitrary", "arbitrary")),
    )(x3, g, b_)


# ----------------------------- normalize pass -----------------------------

def _normalize_flat_kernel(x_ref, scale_ref, shift_ref, o_ref):
    # x: (1, tile_r, 128); scale/shift: (tile_r, 128) f32, resident across N.
    x = x_ref[...].astype(jnp.float32)
    o_ref[...] = (x * scale_ref[...] + shift_ref[...]).astype(o_ref.dtype)


def _run_normalize_flat(x4, scale_c, shift_c):
    """Lane-dense normalize: x viewed as (N, C*H*W/128, 128)."""
    N, C, H, W = x4.shape
    HW = H * W
    R = (C * HW) // 128
    dt = x4.dtype
    xr = x4.reshape(N, R, 128)                       # free contiguous reshape
    tile_r = _pick_tile_r(R)
    # Pre-expanded per-element scale/shift planes (tiny one-off XLA broadcast).
    scale_plane = jnp.broadcast_to(scale_c.reshape(C, 1), (C, HW)).reshape(R, 128)
    shift_plane = jnp.broadcast_to(shift_c.reshape(C, 1), (C, HW)).reshape(R, 128)
    out = pl.pallas_call(
        _normalize_flat_kernel,
        out_shape=jax.ShapeDtypeStruct((N, R, 128), dt),
        grid_spec=pltpu.PrefetchScalarGridSpec(
            num_scalar_prefetch=0,
            # Row-tile axis OUTER, N inner -> scale/shift blocks keep a
            # constant block index across the inner axis and stay resident.
            grid=(R // tile_r, N),
            in_specs=[
                pl.BlockSpec((1, tile_r, 128), lambda t, n: (n, t, 0)),
                pl.BlockSpec((tile_r, 128), lambda t, n: (t, 0)),
                pl.BlockSpec((tile_r, 128), lambda t, n: (t, 0)),
            ],
            out_specs=pl.BlockSpec((1, tile_r, 128), lambda t, n: (n, t, 0)),
        ),
        compiler_params=pltpu.CompilerParams(
            dimension_semantics=("parallel", "parallel")),
    )(xr, scale_plane, shift_plane)
    return out.reshape(N, C, H, W)


def _normalize_chw_kernel(x_ref, scale_ref, shift_ref, o_ref):
    # Fallback layout: x (1, C, tile_hw); scale/shift (C, 1) f32.
    x = x_ref[...].astype(jnp.float32)
    o_ref[...] = (x * scale_ref[...] + shift_ref[...]).astype(o_ref.dtype)


def _run_normalize_chw(x4, scale_c, shift_c):
    """Fallback when C*H*W is not a multiple of 128 (rare for CNN stages)."""
    N, C, H, W = x4.shape
    HW = H * W
    dt = x4.dtype
    x3 = x4.reshape(N, C, HW)
    itemsize = jnp.dtype(dt).itemsize
    if HW % 128 == 0:
        cap = max(128, ((1 << 20) // max(1, C * itemsize)) // 128 * 128)
        tile_hw, t, limit = 128, 128, min(HW, cap)
        while t <= limit:
            if HW % t == 0:
                tile_hw = t
            t += 128
    else:
        tile_hw = HW  # full-extent lane block (padded lanes; fallback only)
    out = pl.pallas_call(
        _normalize_chw_kernel,
        out_shape=jax.ShapeDtypeStruct((N, C, HW), dt),
        grid_spec=pltpu.PrefetchScalarGridSpec(
            num_scalar_prefetch=0,
            grid=(HW // tile_hw, N),
            in_specs=[
                pl.BlockSpec((1, C, tile_hw), lambda t, n: (n, 0, t)),
                pl.BlockSpec((C, 1), lambda t, n: (0, 0)),
                pl.BlockSpec((C, 1), lambda t, n: (0, 0)),
            ],
            out_specs=pl.BlockSpec((1, C, tile_hw), lambda t, n: (n, 0, t)),
        ),
        compiler_params=pltpu.CompilerParams(
            dimension_semantics=("parallel", "parallel")),
    )(x3, scale_c, shift_c)
    return out.reshape(N, C, H, W)


# ----------------------------- public wrapper -----------------------------

def cross_training_bn_adv(x_nchw, gamma, beta, running_mean, running_std,
                          *, momentum=0.1, training=True):
    """Returns (out_nchw, new_running_mean, new_running_std).

    gamma / beta / running_* have shape (1, C, 1, 1) like the PyTorch module.
    """
    N, C, H, W = x_nchw.shape
    HW = H * W
    g = gamma.reshape(C, 1).astype(jnp.float32)
    b_ = beta.reshape(C, 1).astype(jnp.float32)

    if training:
        assert N % 2 == 0, "batch must be cat([adv, clean]) -> even"
        bs = N // 2
        x3 = x_nchw.reshape(N, C, HW)
        nb, tile_hw = _pick_stats_block(bs, C, HW, jnp.dtype(x_nchw.dtype).itemsize)
        mean, std, scale, shift = _run_stats(x3, g, b_, bs, nb, tile_hw)

        mean4 = mean.reshape(1, C, 1, 1).astype(running_mean.dtype)
        std4 = std.reshape(1, C, 1, 1).astype(running_std.dtype)
        new_rm = running_mean + momentum * (mean4 - running_mean)
        new_rs = running_std + momentum * (std4 - running_std)
    else:
        rm = running_mean.reshape(C, 1).astype(jnp.float32)
        rs = running_std.reshape(C, 1).astype(jnp.float32)
        scale = g / rs                       # NOTE: no eps, matching the module
        shift = b_ - rm * scale
        new_rm, new_rs = running_mean, running_std

    if (C * HW) % 128 == 0:
        out = _run_normalize_flat(x_nchw, scale, shift)
    else:
        out = _run_normalize_chw(x_nchw, scale, shift)
    return out, new_rm, new_rs


# ----------------------------- plain-JAX references -----------------------------

def _reference_train(x, gamma, beta, running_mean, running_std, momentum=0.1):
    bs = x.shape[0] // 2
    xh = x[:bs]
    mean = jnp.mean(xh, axis=(0, 2, 3), keepdims=True)
    n = xh.shape[0] * xh.shape[2] * xh.shape[3]
    var = jnp.sum((xh - mean) ** 2, axis=(0, 2, 3), keepdims=True) / (n - 1)
    std = jnp.sqrt(var)
    out = ((x - mean) / std) * gamma + beta
    new_rm = running_mean + momentum * (mean - running_mean)
    new_rs = running_std + momentum * (std - running_std)
    return out, new_rm, new_rs


def _reference_eval(x, gamma, beta, running_mean, running_std):
    return gamma * ((x - running_mean) / running_std) + beta


if __name__ == "__main__":
    key = jax.random.PRNGKey(0)

    # ---- training path, H*W a multiple of 128 (flattened lane-dense path) ----
    N, C, H, W = 4, 8, 16, 16            # batch = cat([adv, clean]) -> even
    x = jax.random.normal(key, (N, C, H, W), dtype=jnp.float32)
    gamma = jnp.ones((1, C, 1, 1), jnp.float32)
    beta = jnp.zeros((1, C, 1, 1), jnp.float32)
    running_mean = jnp.ones((1, C, 1, 1), jnp.float32)
    running_std = jnp.zeros((1, C, 1, 1), jnp.float32)

    out, new_rm, new_rs = cross_training_bn_adv(
        x, gamma, beta, running_mean, running_std, momentum=0.1, training=True)
    jax.block_until_ready(out)
    jax.block_until_ready(new_rm)
    jax.block_until_ready(new_rs)

    ref_out, ref_rm, ref_rs = _reference_train(
        x, gamma, beta, running_mean, running_std, momentum=0.1)
    assert jnp.allclose(out, ref_out, atol=1e-4, rtol=1e-4), "train output mismatch"
    assert jnp.allclose(new_rm, ref_rm, atol=1e-5, rtol=1e-5), "running mean mismatch"
    assert jnp.allclose(new_rs, ref_rs, atol=1e-5, rtol=1e-5), "running std mismatch"

    # ---- training path, H*W NOT a multiple of 128 (ResNet 7x7-style layer) ----
    N2, C2, H2, W2 = 4, 128, 7, 7
    x2 = jax.random.normal(jax.random.PRNGKey(1), (N2, C2, H2, W2), jnp.float32)
    gamma2 = 1.0 + 0.1 * jax.random.normal(jax.random.PRNGKey(2), (1, C2, 1, 1))
    beta2 = 0.1 * jax.random.normal(jax.random.PRNGKey(3), (1, C2, 1, 1))
    rm2 = jnp.ones((1, C2, 1, 1), jnp.float32)
    rs2 = jnp.zeros((1, C2, 1, 1), jnp.float32)
    out2, nrm2, nrs2 = cross_training_bn_adv(
        x2, gamma2, beta2, rm2, rs2, momentum=0.1, training=True)
    jax.block_until_ready(out2)
    ref_out2, ref_rm2, ref_rs2 = _reference_train(
        x2, gamma2, beta2, rm2, rs2, momentum=0.1)
    assert jnp.allclose(out2, ref_out2, atol=1e-4, rtol=1e-4), "7x7 train output mismatch"
    assert jnp.allclose(nrm2, ref_rm2, atol=1e-5, rtol=1e-5), "7x7 running mean mismatch"
    assert jnp.allclose(nrs2, ref_rs2, atol=1e-5, rtol=1e-5), "7x7 running std mismatch"

    # ---- eval path smoke test (use non-degenerate running stats) ----
    rm_e = 0.1 * jnp.ones((1, C, 1, 1), jnp.float32)
    rs_e = 1.5 * jnp.ones((1, C, 1, 1), jnp.float32)
    out_e, _, _ = cross_training_bn_adv(
        x, gamma, beta, rm_e, rs_e, momentum=0.1, training=False)
    jax.block_until_ready(out_e)
    ref_e = _reference_eval(x, gamma, beta, rm_e, rs_e)
    assert jnp.allclose(out_e, ref_e, atol=1e-4, rtol=1e-4), "eval output mismatch"

    print("KERNEL_OK")
</pallas_src>

<mosaic_0001>
module attributes {stable_mosaic.version = 11 : i64} {
  func.func @_stats_kernel(%arg0: i32, %arg1: i32, %arg2: memref<2x8x256xf32, #tpu.memory_space<vmem>>, %arg3: memref<8x1xf32, #tpu.memory_space<vmem>>, %arg4: memref<8x1xf32, #tpu.memory_space<vmem>>, %arg5: memref<8x1xf32, #tpu.memory_space<vmem>>, %arg6: memref<8x1xf32, #tpu.memory_space<vmem>>, %arg7: memref<8x1xf32, #tpu.memory_space<vmem>>, %arg8: memref<8x1xf32, #tpu.memory_space<vmem>>, %arg9: memref<8x128xf32, #tpu.memory_space<vmem>>, %arg10: memref<8x128xf32, #tpu.memory_space<vmem>>) attributes {dimension_semantics = [#tpu.dimension_semantics<arbitrary>, #tpu.dimension_semantics<arbitrary>], iteration_bounds = array<i64: 1, 1>, scalar_prefetch = 0 : i64, scratch_operands = 2 : i64, tpu.core_type = #tpu.core_type<tc>, window_params = [{transform_indices = @transform_0, window_bounds = array<i64: 2, 8, 256>}, {pipeline_mode = #tpu.pipeline_mode<synchronous>, transform_indices = @transform_1, window_bounds = array<i64: 8, 1>}, {pipeline_mode = #tpu.pipeline_mode<synchronous>, transform_indices = @transform_2, window_bounds = array<i64: 8, 1>}, {pipeline_mode = #tpu.pipeline_mode<synchronous>, transform_indices = @transform_3, window_bounds = array<i64: 8, 1>}, {pipeline_mode = #tpu.pipeline_mode<synchronous>, transform_indices = @transform_4, window_bounds = array<i64: 8, 1>}, {pipeline_mode = #tpu.pipeline_mode<synchronous>, transform_indices = @transform_5, window_bounds = array<i64: 8, 1>}, {pipeline_mode = #tpu.pipeline_mode<synchronous>, transform_indices = @transform_6, window_bounds = array<i64: 8, 1>}]} {
    %c0_i32 = arith.constant 0 : i32
    %0 = arith.cmpi eq, %arg0, %c0_i32 : i32
    %c0_i32_0 = arith.constant 0 : i32
    %1 = arith.cmpi eq, %arg1, %c0_i32_0 : i32
    %2 = arith.andi %0, %1 : i1
    %3 = arith.extui %2 : i1 to i32
    %c0_i32_1 = arith.constant 0 : i32
    %4 = arith.cmpi ne, %3, %c0_i32_1 : i32
    scf.if %4 {
      %cst_24 = arith.constant 0.000000e+00 : f32
      %30 = vector.broadcast %cst_24 : f32 to vector<8x128xf32>
      %c0_25 = arith.constant 0 : index
      %c0_26 = arith.constant 0 : index
      %31 = vector.load %arg9[%c0_25, %c0_26] : memref<8x128xf32, #tpu.memory_space<vmem>>, vector<8x128xf32>
      tpu.vector_store %arg9[%c0_25, %c0_26], %30 {strides = array<i32>} : memref<8x128xf32, #tpu.memory_space<vmem>>, vector<8x128xf32>,
      %cst_27 = arith.constant 0.000000e+00 : f32
      %32 = vector.broadcast %cst_27 : f32 to vector<8x128xf32>
      %c0_28 = arith.constant 0 : index
      %c0_29 = arith.constant 0 : index
      %33 = vector.load %arg10[%c0_28, %c0_29] : memref<8x128xf32, #tpu.memory_space<vmem>>, vector<8x128xf32>
      tpu.vector_store %arg10[%c0_28, %c0_29], %32 {strides = array<i32>} : memref<8x128xf32, #tpu.memory_space<vmem>>, vector<8x128xf32>,
    } else {
    }
    %c0 = arith.constant 0 : index
    %c0_2 = arith.constant 0 : index
    %c0_3 = arith.constant 0 : index
    %5 = vector.load %arg2[%c0, %c0_2, %c0_3] : memref<2x8x256xf32, #tpu.memory_space<vmem>>, vector<2x8x256xf32>
    %cst = arith.constant dense<0.000000e+00> : vector<8x256xf32>
    %6 = vector.multi_reduction <add>, %5, %cst [0] : vector<2x8x256xf32> to vector<8x256xf32>
    %7 = arith.mulf %5, %5 : vector<2x8x256xf32>
    %cst_4 = arith.constant dense<0.000000e+00> : vector<8x256xf32>
    %8 = vector.multi_reduction <add>, %7, %cst_4 [0] : vector<2x8x256xf32> to vector<8x256xf32>
    %c0_5 = arith.constant 0 : index
    %c0_6 = arith.constant 0 : index
    %9 = vector.load %arg9[%c0_5, %c0_6] : memref<8x128xf32, #tpu.memory_space<vmem>>, vector<8x128xf32>
    %10 = vector.extract_strided_slice %6 {offsets = [0, 0], sizes = [8, 128], strides = [1, 1]} : vector<8x256xf32> to vector<8x128xf32>
    %11 = arith.addf %9, %10 : vector<8x128xf32>
    %c0_7 = arith.constant 0 : index
    %c0_8 = arith.constant 0 : index
    %12 = vector.load %arg9[%c0_7, %c0_8] : memref<8x128xf32, #tpu.memory_space<vmem>>, vector<8x128xf32>
    tpu.vector_store %arg9[%c0_7, %c0_8], %11 {strides = array<i32>} : memref<8x128xf32, #tpu.memory_space<vmem>>, vector<8x128xf32>,
    %c0_9 = arith.constant 0 : index
    %c0_10 = arith.constant 0 : index
    %13 = vector.load %arg10[%c0_9, %c0_10] : memref<8x128xf32, #tpu.memory_space<vmem>>, vector<8x128xf32>
    %14 = vector.extract_strided_slice %8 {offsets = [0, 0], sizes = [8, 128], strides = [1, 1]} : vector<8x256xf32> to vector<8x128xf32>
    %15 = arith.addf %13, %14 : vector<8x128xf32>
    %c0_11 = arith.constant 0 : index
    %c0_12 = arith.constant 0 : index
    %16 = vector.load %arg10[%c0_11, %c0_12] : memref<8x128xf32, #tpu.memory_space<vmem>>, vector<8x128xf32>
    tpu.vector_store %arg10[%c0_11, %c0_12], %15 {strides = array<i32>} : memref<8x128xf32, #tpu.memory_space<vmem>>, vector<8x128xf32>,
    %c0_13 = arith.constant 0 : index
    %c0_14 = arith.constant 0 : index
    %17 = vector.load %arg9[%c0_13, %c0_14] : memref<8x128xf32, #tpu.memory_space<vmem>>, vector<8x128xf32>
    %18 = vector.extract_strided_slice %6 {offsets = [0, 128], sizes = [8, 128], strides = [1, 1]} : vector<8x256xf32> to vector<8x128xf32>
    %19 = arith.addf %17, %18 : vector<8x128xf32>
    %c0_15 = arith.constant 0 : index
    %c0_16 = arith.constant 0 : index
    %20 = vector.load %arg9[%c0_15, %c0_16] : memref<8x128xf32, #tpu.memory_space<vmem>>, vector<8x128xf32>
    tpu.vector_store %arg9[%c0_15, %c0_16], %19 {strides = array<i32>} : memref<8x128xf32, #tpu.memory_space<vmem>>, vector<8x128xf32>,
    %c0_17 = arith.constant 0 : index
    %c0_18 = arith.constant 0 : index
    %21 = vector.load %arg10[%c0_17, %c0_18] : memref<8x128xf32, #tpu.memory_space<vmem>>, vector<8x128xf32>
    %22 = vector.extract_strided_slice %8 {offsets = [0, 128], sizes = [8, 128], strides = [1, 1]} : vector<8x256xf32> to vector<8x128xf32>
    %23 = arith.addf %21, %22 : vector<8x128xf32>
    %c0_19 = arith.constant 0 : index
    %c0_20 = arith.constant 0 : index
    %24 = vector.load %arg10[%c0_19, %c0_20] : memref<8x128xf32, #tpu.memory_space<vmem>>, vector<8x128xf32>
    tpu.vector_store %arg10[%c0_19, %c0_20], %23 {strides = array<i32>} : memref<8x128xf32, #tpu.memory_space<vmem>>, vector<8x128xf32>,
    %c0_i32_21 = arith.constant 0 : i32
    %25 = arith.cmpi eq, %arg0, %c0_i32_21 : i32
    %c0_i32_22 = arith.constant 0 : i32
    %26 = arith.cmpi eq, %arg1, %c0_i32_22 : i32
    %27 = arith.andi %25, %26 : i1
    %28 = arith.extui %27 : i1 to i32
    %c0_i32_23 = arith.constant 0 : i32
    %29 = arith.cmpi ne, %28, %c0_i32_23 : i32
    scf.if %29 {
      %c0_24 = arith.constant 0 : index
      %c0_25 = arith.constant 0 : index
      %30 = vector.load %arg9[%c0_24, %c0_25] : memref<8x128xf32, #tpu.memory_space<vmem>>, vector<8x128xf32>
      %cst_26 = arith.constant dense<0.000000e+00> : vector<8xf32>
      %31 = vector.multi_reduction <add>, %30, %cst_26 [1] : vector<8x128xf32> to vector<8xf32>
      %32 = vector.shape_cast %31 : vector<8xf32> to vector<8x1xf32>
      %c0_27 = arith.constant 0 : index
      %c0_28 = arith.constant 0 : index
      %33 = vector.load %arg10[%c0_27, %c0_28] : memref<8x128xf32, #tpu.memory_space<vmem>>, vector<8x128xf32>
      %cst_29 = arith.constant dense<0.000000e+00> : vector<8xf32>
      %34 = vector.multi_reduction <add>, %33, %cst_29 [1] : vector<8x128xf32> to vector<8xf32>
      %35 = vector.shape_cast %34 : vector<8xf32> to vector<8x1xf32>
      %cst_30 = arith.constant 0.001953125 : f32
      %36 = vector.broadcast %cst_30 : f32 to vector<8x1xf32>
      %37 = arith.mulf %32, %36 : vector<8x1xf32>
      %cst_31 = arith.constant 5.120000e+02 : f32
      %38 = vector.broadcast %cst_31 : f32 to vector<8x1xf32>
      %39 = arith.mulf %38, %37 : vector<8x1xf32>
      %40 = arith.mulf %39, %37 : vector<8x1xf32>
      %41 = arith.subf %35, %40 : vector<8x1xf32>
      %cst_32 = arith.constant 0.00195694715 : f32
      %42 = vector.broadcast %cst_32 : f32 to vector<8x1xf32>
      %43 = arith.mulf %41, %42 : vector<8x1xf32>
      %cst_33 = arith.constant 0.000000e+00 : f32
      %44 = vector.broadcast %cst_33 : f32 to vector<8x1xf32>
      %45 = arith.maximumf %43, %44 : vector<8x1xf32>
      %46 = math.sqrt %45 : vector<8x1xf32>
      %c0_34 = arith.constant 0 : index
      %c0_35 = arith.constant 0 : index
      %47 = vector.load %arg3[%c0_34, %c0_35] : memref<8x1xf32, #tpu.memory_space<vmem>>, vector<8x1xf32>
      %48 = arith.divf %47, %46 : vector<8x1xf32>
      %c0_36 = arith.constant 0 : index
      %c0_37 = arith.constant 0 : index
      %49 = vector.load %arg4[%c0_36, %c0_37] : memref<8x1xf32, #tpu.memory_space<vmem>>, vector<8x1xf32>
      %50 = arith.mulf %37, %48 : vector<8x1xf32>
      %51 = arith.subf %49, %50 : vector<8x1xf32>
      %c0_38 = arith.constant 0 : index
      %c0_39 = arith.constant 0 : index
      %52 = vector.load %arg5[%c0_38, %c0_39] : memref<8x1xf32, #tpu.memory_space<vmem>>, vector<8x1xf32>
      tpu.vector_store %arg5[%c0_38, %c0_39], %37 {strides = array<i32>} : memref<8x1xf32, #tpu.memory_space<vmem>>, vector<8x1xf32>,
      %c0_40 = arith.constant 0 : index
      %c0_41 = arith.constant 0 : index
      %53 = vector.load %arg6[%c0_40, %c0_41] : memref<8x1xf32, #tpu.memory_space<vmem>>, vector<8x1xf32>
      tpu.vector_store %arg6[%c0_40, %c0_41], %46 {strides = array<i32>} : memref<8x1xf32, #tpu.memory_space<vmem>>, vector<8x1xf32>,
      %c0_42 = arith.constant 0 : index
      %c0_43 = arith.constant 0 : index
      %54 = vector.load %arg7[%c0_42, %c0_43] : memref<8x1xf32, #tpu.memory_space<vmem>>, vector<8x1xf32>
      tpu.vector_store %arg7[%c0_42, %c0_43], %48 {strides = array<i32>} : memref<8x1xf32, #tpu.memory_space<vmem>>, vector<8x1xf32>,
      %c0_44 = arith.constant 0 : index
      %c0_45 = arith.constant 0 : index
      %55 = vector.load %arg8[%c0_44, %c0_45] : memref<8x1xf32, #tpu.memory_space<vmem>>, vector<8x1xf32>
      tpu.vector_store %arg8[%c0_44, %c0_45], %51 {strides = array<i32>} : memref<8x1xf32, #tpu.memory_space<vmem>>, vector<8x1xf32>,
    } else {
    }
    return
  }
  func.func @transform_0(%arg0: i32, %arg1: i32) -> (i32, i32, i32) {
    %c0_i32 = arith.constant 0 : i32
    %c0_i32_0 = arith.constant 0 : i32
    return %arg0, %c0_i32, %arg1 : i32, i32, i32
  }
  func.func @transform_1(%arg0: i32, %arg1: i32) -> (i32, i32) {
    %c0_i32 = arith.constant 0 : i32
    %c0_i32_0 = arith.constant 0 : i32
    %c0_i32_1 = arith.constant 0 : i32
    return %c0_i32, %c0_i32_0 : i32, i32
  }
  func.func @transform_2(%arg0: i32, %arg1: i32) -> (i32, i32) {
    %c0_i32 = arith.constant 0 : i32
    %c0_i32_0 = arith.constant 0 : i32
    %c0_i32_1 = arith.constant 0 : i32
    return %c0_i32, %c0_i32_0 : i32, i32
  }
  func.func @transform_3(%arg0: i32, %arg1: i32) -> (i32, i32) {
    %c0_i32 = arith.constant 0 : i32
    %c0_i32_0 = arith.constant 0 : i32
    %c0_i32_1 = arith.constant 0 : i32
    return %c0_i32, %c0_i32_0 : i32, i32
  }
  func.func @transform_4(%arg0: i32, %arg1: i32) -> (i32, i32) {
    %c0_i32 = arith.constant 0 : i32
    %c0_i32_0 = arith.constant 0 : i32
    %c0_i32_1 = arith.constant 0 : i32
    return %c0_i32, %c0_i32_0 : i32, i32
  }
  func.func @transform_5(%arg0: i32, %arg1: i32) -> (i32, i32) {
    %c0_i32 = arith.constant 0 : i32
    %c0_i32_0 = arith.constant 0 : i32
    %c0_i32_1 = arith.constant 0 : i32
    return %c0_i32, %c0_i32_0 : i32, i32
  }
  func.func @transform_6(%arg0: i32, %arg1: i32) -> (i32, i32) {
    %c0_i32 = arith.constant 0 : i32
    %c0_i32_0 = arith.constant 0 : i32
    %c0_i32_1 = arith.constant 0 : i32
    return %c0_i32, %c0_i32_0 : i32, i32
  }
}

</mosaic_0001>

<llo_original>
// kernel: tpu_custom_call.1
$region0: #{tpu_custom_call.1}
  #allocation0 [shape = 'u32[]', space=smem, size = 0x4, offset = 0x4, fixed_abs, tag = 'smem constant byte address 0x4 - core index']
  #allocation1 [shape = 'u32[144,128]{1,0:T(1,128)}', space=vmem, size = 0x12000, scoped, tag = 'internal scratch']
  #allocation2 [shape = 'f32[8,128]{1,0:T(8,128)}', space=vmem, size = 0x1000, scoped, tag = 'scratch operand']
  #allocation3 [shape = 'f32[8,128]{1,0:T(8,128)}', space=vmem, size = 0x1000, scoped, tag = 'scratch operand']
  %s0 = inlined_call_operand.hbm [shape: f32[4,8,256], index: 0, kind: input, shape index: {}]
  %s1 = inlined_call_operand.vmem [shape: f32[8,1], index: 1, kind: input, shape index: {}]
  %s2 = inlined_call_operand.vmem [shape: f32[8,1], index: 2, kind: input, shape index: {}]
  %s3 = inlined_call_operand.vmem [shape: f32[8,1], index: 3, kind: output, shape index: {0}]
  %s4 = inlined_call_operand.vmem [shape: f32[8,1], index: 4, kind: output, shape index: {1}]
  %s5 = inlined_call_operand.vmem [shape: f32[8,1], index: 5, kind: output, shape index: {2}]
  %s6 = inlined_call_operand.vmem [shape: f32[8,1], index: 6, kind: output, shape index: {3}]
  %7 = xla_tuple %s3, %s4, %s5, %s6
  %s8 = sld [smem:[#allocation0]]
  $region58: #{tpu_custom_call.1} parent=0
    _
  %s10 = ssub.s32 1, %s8
  %s11 = scalar_select 0, %s10, %s8
  $region1: #{tpu_custom_call.1} parent=0
    #allocation4 [shape = 'u8[16384]{0}', space=vmem, size = 0x4000, scoped, tag = 'input window, operand 0, single buffered']
    #allocation5 [shape = 's32[1]{0}', space=sflag, size = 0x4, scoped, tag = 'scoped memory for tpu_custom_call.1']
    %12 = vsyncpa [#allocation5], 0
    // Predicated region
    $region2: #{tpu_custom_call.1} parent=1 // pred_check
      _
    $region3: #{tpu_custom_call.1} parent=1 // pred_check_branch
      %14 = sbr.rel (0) target = $region5
    $region4: #{tpu_custom_call.1} parent=1 // pred_region
      %s16 = ssub.s32 512, 512
      %17 = vsyncadd [#allocation5], %s16
      %s18 = sshll.u32 [#allocation4], 4
      %s19 = int_to_ptr.vmem [resolvable:$true] %s18
      %24 = dma.hbm_to_vmem [thread:$0]  %s0, 512, %s19, [#allocation5], 256, 256, 16
    $region5: #{tpu_custom_call.1} parent=1 // pred_fallthru
      _
    // Predicated region
    $region6: #{tpu_custom_call.1} parent=1 // pred_check
      _
    $region7: #{tpu_custom_call.1} parent=1 // pred_check_branch
      %26 = sbr.rel (0) target = $region9
    $region8: #{tpu_custom_call.1} parent=1 // pred_region
      _
    $region9: #{tpu_custom_call.1} parent=1 // pred_fallthru
      _
    // Predicated region
    $region10: #{tpu_custom_call.1} parent=1 // pred_check
      _
    $region11: #{tpu_custom_call.1} parent=1 // pred_check_branch
      %28 = sbr.rel (0) target = $region13
    $region12: #{tpu_custom_call.1} parent=1 // pred_region
      _
    $region13: #{tpu_custom_call.1} parent=1 // pred_fallthru
      _
    // Predicated region
    $region14: #{tpu_custom_call.1} parent=1 // pred_check
      _
    $region15: #{tpu_custom_call.1} parent=1 // pred_check_branch
      %30 = sbr.rel (0) target = $region17
    $region16: #{tpu_custom_call.1} parent=1 // pred_region
      %31 = dma.done [#allocation5], 512
    $region17: #{tpu_custom_call.1} parent=1 // pred_fallthru
      _
    %p32 = scmp.eq.s32.totalorder 0, 0
    %p33 = scmp.eq.s32.totalorder 0, 0
    %p34 = pnand %p32, %p33
    %p35 = pneg %p34
    // Predicated region
    $region18: #{tpu_custom_call.1} parent=1 // pred_check
      _
    $region19: #{tpu_custom_call.1} parent=1 // pred_check_branch
      %37 = sbr.rel (%p34) target = $region21
    $region20: #{tpu_custom_call.1} parent=1 // pred_region
      %38 = vst [vmem:[#allocation2] sm:$0xff] 0.0
      %39 = vst [vmem:[#allocation3] sm:$0xff] 0.0
    $region21: #{tpu_custom_call.1} parent=1 // pred_fallthru
      _
    %v40 = vld [vmem:[#allocation4] sm:$0xff]
    %v41 = vld [vmem:[#allocation4 + $0x8] sm:$0xff]
    %v42 = vld [vmem:[#allocation4 + $0x10] sm:$0xff]
    %v43 = vld [vmem:[#allocation4 + $0x18] sm:$0xff]
    %v44 = vadd.f32 %v40, %v42
    %v45 = vadd.f32 %v41, %v43
    %v46 = vmul.f32 %v40, %v40
    %v47 = vmul.f32 %v41, %v41
    %v48 = vmul.f32 %v42, %v42
    %v49 = vmul.f32 %v43, %v43
    %v50 = vadd.f32 %v46, %v48
    %v51 = vadd.f32 %v47, %v49
    %v52 = vld [vmem:[#allocation2] sm:$0xff]
    %v53 = vadd.f32 %v52, %v44
    %54 = vst [vmem:[#allocation2] sm:$0xff] %v53
    %v55 = vld [vmem:[#allocation3] sm:$0xff]
    %v56 = vadd.f32 %v55, %v50
    %57 = vst [vmem:[#allocation3] sm:$0xff] %v56
    %v58 = vld [vmem:[#allocation2] sm:$0xff]
    %v59 = vadd.f32 %v58, %v45
    %60 = vst [vmem:[#allocation2] sm:$0xff] %v59
    %v61 = vld [vmem:[#allocation3] sm:$0xff]
    %v62 = vadd.f32 %v61, %v51
    %63 = vst [vmem:[#allocation3] sm:$0xff] %v62
    // Predicated region
    $region22: #{tpu_custom_call.1} parent=1 // pred_check
      _
    $region23: #{tpu_custom_call.1} parent=1 // pred_check_branch
      %65 = sbr.rel (%p34) target = $region25
    $region24: #{tpu_custom_call.1} parent=1 // pred_region
      %v66 = vld [vmem:[#allocation2] sm:$0xff]
      %67 = vadd.xlane.f32.xlu0 %v66
      %v68 = vpop.xlane.xlu0 %67
      %v69 = vld [vmem:[#allocation3] sm:$0xff]
      %70 = vadd.xlane.f32.xlu0 %v69
      %v71 = vpop.xlane.xlu0 %70
      %v72 = vmul.f32 %v68, 0.001953125
      %v73 = vmul.f32 %v72, 512.0
      %v74 = vmul.f32 %v73, %v72
      %v75 = vsub.f32 %v71, %v74
      %v76 = vmul.f32 %v75, 0.0019569471
      %v77 = vmax.f32 %v76, 0.0
      %v78 = vrsqrt.pop %v77
      %v79 = vmul.f32 %v77, %v78
      %vm80 = vcmp.eq.f32.partialorder %v77, inf
      %v81 = vsel %vm80, %v77, %v79
      %vm82 = vcmp.eq.f32.partialorder %v77, 0.0
      %v83 = vand.u32 %v77, 2147483648
      %v84 = vsel %vm82, %v83, %v81
      %v85 = vld [vmem:[%s1] sm:$0xff]
      %v86 = vrcp.pop %v84
      %v87 = vmul.f32 %v85, %v86
      %v88 = vld [vmem:[%s2] sm:$0xff]
      %v89 = vmul.f32 %v72, %v87
      %v90 = vsub.f32 %v88, %v89
      %vm91 = vcmask 7168
      %92 = vst.msk [vmem:[%s3] sm:$0xff] %vm91, %v72
      %93 = vst.msk [vmem:[%s4] sm:$0xff] %vm91, %v84
      %94 = vst.msk [vmem:[%s5] sm:$0xff] %vm91, %v87
      %95 = vst.msk [vmem:[%s6] sm:$0xff] %vm91, %v90
    $region25: #{tpu_custom_call.1} parent=1 // pred_fallthru
      _
    // Predicated region
    $region26: #{tpu_custom_call.1} parent=1 // pred_check
      _
    $region27: #{tpu_custom_call.1} parent=1 // pred_check_branch
      %97 = sbr.rel (0) target = $region29
    $region28: #{tpu_custom_call.1} parent=1 // pred_region
      _
    $region29: #{tpu_custom_call.1} parent=1 // pred_fallthru
      _
    // Predicated region
    $region30: #{tpu_custom_call.1} parent=1 // pred_check
      _
    $region31: #{tpu_custom_call.1} parent=1 // pred_check_branch
      %99 = sbr.rel (0) target = $region33
    $region32: #{tpu_custom_call.1} parent=1 // pred_region
      _
    $region33: #{tpu_custom_call.1} parent=1 // pred_fallthru
      _
    // Predicated region
    $region34: #{tpu_custom_call.1} parent=1 // pred_check
      _
    $region35: #{tpu_custom_call.1} parent=1 // pred_check_branch
      %101 = sbr.rel (0) target = $region37
    $region36: #{tpu_custom_call.1} parent=1 // pred_region
      _
    $region37: #{tpu_custom_call.1} parent=1 // pred_fallthru
      _
    // Predicated region
    $region38: #{tpu_custom_call.1} parent=1 // pred_check
      _
    $region39: #{tpu_custom_call.1} parent=1 // pred_check_branch
      %103 = sbr.rel (0) target = $region41
    $region40: #{tpu_custom_call.1} parent=1 // pred_region
      _
    $region41: #{tpu_custom_call.1} parent=1 // pred_fallthru
      _
    // Predicated region
    $region42: #{tpu_custom_call.1} parent=1 // pred_check
      _
    $region43: #{tpu_custom_call.1} parent=1 // pred_check_branch
      %105 = sbr.rel (0) target = $region45
    $region44: #{tpu_custom_call.1} parent=1 // pred_region
      _
    $region45: #{tpu_custom_call.1} parent=1 // pred_fallthru
      _
    // Predicated region
    $region46: #{tpu_custom_call.1} parent=1 // pred_check
      _
    $region47: #{tpu_custom_call.1} parent=1 // pred_check_branch
      %107 = sbr.rel (0) target = $region49
    $region48: #{tpu_custom_call.1} parent=1 // pred_region
      _
    $region49: #{tpu_custom_call.1} parent=1 // pred_fallthru
      _
    // Predicated region
    $region50: #{tpu_custom_call.1} parent=1 // pred_check
      _
    $region51: #{tpu_custom_call.1} parent=1 // pred_check_branch
      %109 = sbr.rel (0) target = $region53
    $region52: #{tpu_custom_call.1} parent=1 // pred_region
      _
    $region53: #{tpu_custom_call.1} parent=1 // pred_fallthru
      _
    // Predicated region
    $region54: #{tpu_custom_call.1} parent=1 // pred_check
      _
    $region55: #{tpu_custom_call.1} parent=1 // pred_check_branch
      %111 = sbr.rel (0) target = $region57
    $region56: #{tpu_custom_call.1} parent=1 // pred_region
      _
    $region57: #{tpu_custom_call.1} parent=1 // pred_fallthru
      _
    %112 = vsyncpa [#allocation5], 1

</llo_original>
